<compile_context>
chip_gen: v7x
topology: tpu7x:2x2x1
jax: 0.10.0
libtpu: 0.0.40
codegen_flags: <defaults>
</compile_context>

<pallas_src>
import jax
import jax.numpy as jnp
from jax.experimental import pallas as pl
from jax.experimental.pallas import tpu as pltpu


# Max pixels (lanes) per grid step: multiple of 128, big enough to amortize
# per-grid-step overhead, small enough to be trivial for VMEM on all chips.
_TILE_HW_MAX = 2048


def _relation_kernel(x_ref, w1_ref, t1_ref, w2_ref, b2_ref, out_ref):
    x = x_ref[...]                                    # (Cin, T): channels on sublanes

    # layer1 (1x1 conv) with conv-bias + inference-BN scale pre-folded into W1.
    h = jax.lax.dot_general(
        w1_ref[...], x, dimension_numbers=(((1,), (0,)), ((), ())),
        preferred_element_type=jnp.float32)           # (hidden, T)
    h = jnp.maximum(h + t1_ref[...], 0.0)             # per-channel shift + ReLU

    # layer2 (1x1 conv, 1 output channel) -> already lane-dense (1, T).
    z = jax.lax.dot_general(
        w2_ref[...], h, dimension_numbers=(((1,), (0,)), ((), ())),
        preferred_element_type=jnp.float32)           # (1, T)
    z = z + b2_ref[0, 0]                              # scalar bias from SMEM

    # Exact sigmoid (exp goes to the EUP slot).
    out_ref[...] = 1.0 / (1.0 + jnp.exp(-z))


def relation_network_forward(x, w1, b1, bn_gamma, bn_beta, bn_mean, bn_var,
                             w2, b2, eps=1e-5):
    """x: (B, Cin, H, W) NCHW. w1: (hidden, Cin), b1/BN params: (hidden,),
    w2: (1, hidden), b2: (1,). Returns (B, 1, H, W) float32."""
    B, Cin, H, W = x.shape
    hidden = w1.shape[0]
    HW = H * W

    # Free layout change: NCHW -> (B, Cin, HW). No transpose, no extra HBM pass.
    xf = x.reshape(B, Cin, HW).astype(jnp.float32)

    # Fold conv1 bias + inference BatchNorm:
    #   BN(conv(x)) = (W1 @ x + b1 - mean) * gamma * rsqrt(var+eps) + beta
    #               = (scale[:,None] * W1) @ x + (beta + (b1 - mean) * scale)
    scale = bn_gamma * jax.lax.rsqrt(bn_var + eps)                       # (hidden,)
    w1s = (w1.astype(jnp.float32) * scale[:, None]).astype(jnp.float32)  # (hidden, Cin)
    t1 = (bn_beta + (b1 - bn_mean) * scale).reshape(hidden, 1).astype(jnp.float32)
    w2_2d = w2.reshape(1, hidden).astype(jnp.float32)
    b2_2d = b2.reshape(1, 1).astype(jnp.float32)

    # Pixel-axis tile: full HW when it fits in one tile (block == full dim is always
    # legal), else a multiple-of-128 tile; Pallas masks the ragged last block, so no
    # jnp.pad copy of x is needed.
    tile_hw = HW if HW <= _TILE_HW_MAX else _TILE_HW_MAX
    n_blocks = pl.cdiv(HW, tile_hw)

    cost = pl.CostEstimate(
        flops=2 * B * HW * Cin * hidden + 2 * B * HW * hidden + 2 * B * HW * hidden,
        transcendentals=B * HW,
        bytes_accessed=4 * (B * Cin * HW + B * HW + hidden * Cin + 2 * hidden + 1),
    )

    out = pl.pallas_call(
        _relation_kernel,
        out_shape=jax.ShapeDtypeStruct((B, 1, HW), jnp.float32),
        grid=(B, n_blocks),
        in_specs=[
            # x tile: (Cin, tile_hw), pipelined over batch and pixel blocks.
            pl.BlockSpec((None, Cin, tile_hw), lambda b, i: (b, 0, i)),
            # Resident parameter blocks (same tile every grid step).
            pl.BlockSpec((hidden, Cin), lambda b, i: (0, 0)),      # scale-folded W1
            pl.BlockSpec((hidden, 1), lambda b, i: (0, 0)),        # folded shift
            pl.BlockSpec((1, hidden), lambda b, i: (0, 0)),        # W2
            pl.BlockSpec(memory_space=pltpu.MemorySpace.SMEM),     # b2 scalar in SMEM
        ],
        out_specs=pl.BlockSpec((None, 1, tile_hw), lambda b, i: (b, 0, i)),
        compiler_params=pltpu.CompilerParams(
            dimension_semantics=("parallel", "parallel")),
        cost_estimate=cost,
    )(xf, w1s, t1, w2_2d, b2_2d)

    return out.reshape(B, 1, H, W)


def _reference(x, w1, b1, bn_gamma, bn_beta, bn_mean, bn_var, w2, b2, eps=1e-5):
    """Pure-JAX translation of RelationNetwork.forward (inference-mode BN)."""
    y = jnp.einsum('bchw,oc->bohw', x, w1) + b1[None, :, None, None]
    y = (y - bn_mean[None, :, None, None]) / jnp.sqrt(bn_var[None, :, None, None] + eps)
    y = y * bn_gamma[None, :, None, None] + bn_beta[None, :, None, None]
    y = jnp.maximum(y, 0.0)
    z = jnp.einsum('bchw,oc->bohw', y, w2) + b2[None, :, None, None]
    return jax.nn.sigmoid(z)


if __name__ == "__main__":
    # Small shapes consistent with the module: batch=2, feature_channel=4,
    # spatial 16x16, hidden_size=32, mid_layer_num=0.
    B, Cin, Hs, Ws = 2, 4, 16, 16
    hidden = 32

    key = jax.random.PRNGKey(0)
    (k_x, k_w1, k_b1, k_g, k_be, k_m, k_v, k_w2, k_b2) = jax.random.split(key, 9)

    x = jax.random.normal(k_x, (B, Cin, Hs, Ws), dtype=jnp.float32)
    w1 = jax.random.normal(k_w1, (hidden, Cin), dtype=jnp.float32) / jnp.sqrt(Cin)
    b1 = 0.1 * jax.random.normal(k_b1, (hidden,), dtype=jnp.float32)
    bn_gamma = 1.0 + 0.1 * jax.random.normal(k_g, (hidden,), dtype=jnp.float32)
    bn_beta = 0.1 * jax.random.normal(k_be, (hidden,), dtype=jnp.float32)
    bn_mean = 0.1 * jax.random.normal(k_m, (hidden,), dtype=jnp.float32)
    bn_var = 0.5 + jnp.abs(jax.random.normal(k_v, (hidden,), dtype=jnp.float32))
    w2 = jax.random.normal(k_w2, (1, hidden), dtype=jnp.float32) / jnp.sqrt(hidden)
    b2 = 0.1 * jax.random.normal(k_b2, (1,), dtype=jnp.float32)

    out = relation_network_forward(x, w1, b1, bn_gamma, bn_beta, bn_mean, bn_var, w2, b2)
    out = jax.block_until_ready(out)
    assert out.shape == (B, 1, Hs, Ws)

    ref = _reference(x, w1, b1, bn_gamma, bn_beta, bn_mean, bn_var, w2, b2)
    assert jnp.allclose(out, ref, atol=1e-5, rtol=1e-5), "mismatch vs reference"

    print("KERNEL_OK")
</pallas_src>

<mosaic_0001>
module attributes {stable_mosaic.version = 11 : i64} {
  func.func @_relation_kernel(%arg0: i32, %arg1: i32, %arg2: memref<1x4x256xf32, #tpu.memory_space<vmem>>, %arg3: memref<32x4xf32, #tpu.memory_space<vmem>>, %arg4: memref<32x1xf32, #tpu.memory_space<vmem>>, %arg5: memref<1x32xf32, #tpu.memory_space<vmem>>, %arg6: memref<1x1xf32, #tpu.memory_space<smem>>, %arg7: memref<1x1x256xf32, #tpu.memory_space<vmem>>) attributes {dimension_semantics = [#tpu.dimension_semantics<parallel>, #tpu.dimension_semantics<parallel>], iteration_bounds = array<i64: 2, 1>, scalar_prefetch = 0 : i64, scratch_operands = 0 : i64, tpu.core_type = #tpu.core_type<tc>, window_params = [{transform_indices = @transform_0, window_bounds = array<i64: 1, 4, 256>}, {pipeline_mode = #tpu.pipeline_mode<synchronous>, transform_indices = @transform_1, window_bounds = array<i64: 32, 4>}, {pipeline_mode = #tpu.pipeline_mode<synchronous>, transform_indices = @transform_2, window_bounds = array<i64: 32, 1>}, {pipeline_mode = #tpu.pipeline_mode<synchronous>, transform_indices = @transform_3, window_bounds = array<i64: 1, 32>}, {transform_indices = @transform_4, window_bounds = array<i64: 1, 1>}, {transform_indices = @transform_5, window_bounds = array<i64: 1, 1, 256>}]} {
    %c0 = arith.constant 0 : index
    %c0_0 = arith.constant 0 : index
    %c0_1 = arith.constant 0 : index
    %0 = vector.load %arg2[%c0, %c0_0, %c0_1] : memref<1x4x256xf32, #tpu.memory_space<vmem>>, vector<1x4x256xf32>
    %1 = vector.shape_cast %0 : vector<1x4x256xf32> to vector<4x256xf32>
    %c0_2 = arith.constant 0 : index
    %c0_3 = arith.constant 0 : index
    %2 = vector.load %arg3[%c0_2, %c0_3] : memref<32x4xf32, #tpu.memory_space<vmem>>, vector<32x4xf32>
    %cst = arith.constant dense<0.000000e+00> : vector<32x256xf32>
    %3 = tpu.matmul %2, %1, %cst {dimension_numbers = #tpu.dot_dimension_numbers<[1], [0], [0], [1], [0, 0, 1, 1], [], []>} : vector<32x4xf32>, vector<4x256xf32>, vector<32x256xf32> -> vector<32x256xf32>
    %c0_4 = arith.constant 0 : index
    %c0_5 = arith.constant 0 : index
    %4 = vector.load %arg4[%c0_4, %c0_5] : memref<32x1xf32, #tpu.memory_space<vmem>>, vector<32x1xf32>
    %5 = vector.broadcast %4 : vector<32x1xf32> to vector<32x256xf32>
    %6 = arith.addf %3, %5 : vector<32x256xf32>
    %cst_6 = arith.constant 0.000000e+00 : f32
    %7 = vector.broadcast %cst_6 : f32 to vector<32x256xf32>
    %8 = arith.maximumf %6, %7 : vector<32x256xf32>
    %c0_7 = arith.constant 0 : index
    %c0_8 = arith.constant 0 : index
    %9 = vector.load %arg5[%c0_7, %c0_8] : memref<1x32xf32, #tpu.memory_space<vmem>>, vector<1x32xf32>
    %cst_9 = arith.constant dense<0.000000e+00> : vector<1x256xf32>
    %10 = tpu.matmul %9, %8, %cst_9 {dimension_numbers = #tpu.dot_dimension_numbers<[1], [0], [0], [1], [0, 0, 1, 1], [], []>} : vector<1x32xf32>, vector<32x256xf32>, vector<1x256xf32> -> vector<1x256xf32>
    %c0_10 = arith.constant 0 : index
    %c0_11 = arith.constant 0 : index
    %11 = memref.load %arg6[%c0_10, %c0_11] : memref<1x1xf32, #tpu.memory_space<smem>>
    %12 = vector.broadcast %11 : f32 to vector<1x256xf32>
    %13 = arith.addf %10, %12 : vector<1x256xf32>
    %cst_12 = arith.constant 0.000000e+00 : f32
    %14 = vector.broadcast %cst_12 : f32 to vector<1x256xf32>
    %15 = arith.subf %14, %13 : vector<1x256xf32>
    %16 = math.exp %15 : vector<1x256xf32>
    %cst_13 = arith.constant 1.000000e+00 : f32
    %17 = vector.broadcast %cst_13 : f32 to vector<1x256xf32>
    %18 = arith.addf %17, %16 : vector<1x256xf32>
    %cst_14 = arith.constant 1.000000e+00 : f32
    %19 = vector.broadcast %cst_14 : f32 to vector<1x256xf32>
    %20 = arith.divf %19, %18 : vector<1x256xf32>
    %c0_15 = arith.constant 0 : index
    %c0_16 = arith.constant 0 : index
    %c0_17 = arith.constant 0 : index
    %21 = vector.load %arg7[%c0_15, %c0_16, %c0_17] : memref<1x1x256xf32, #tpu.memory_space<vmem>>, vector<1x1x256xf32>
    %22 = vector.shape_cast %21 : vector<1x1x256xf32> to vector<1x256xf32>
    %23 = vector.shape_cast %20 : vector<1x256xf32> to vector<1x1x256xf32>
    tpu.vector_store %arg7[%c0_15, %c0_16, %c0_17], %23 {strides = array<i32>} : memref<1x1x256xf32, #tpu.memory_space<vmem>>, vector<1x1x256xf32>,
    return
  }
  func.func @transform_0(%arg0: i32, %arg1: i32) -> (i32, i32, i32) {
    %c0_i32 = arith.constant 0 : i32
    %c0_i32_0 = arith.constant 0 : i32
    return %arg0, %c0_i32, %arg1 : i32, i32, i32
  }
  func.func @transform_1(%arg0: i32, %arg1: i32) -> (i32, i32) {
    %c0_i32 = arith.constant 0 : i32
    %c0_i32_0 = arith.constant 0 : i32
    %c0_i32_1 = arith.constant 0 : i32
    return %c0_i32, %c0_i32_0 : i32, i32
  }
  func.func @transform_2(%arg0: i32, %arg1: i32) -> (i32, i32) {
    %c0_i32 = arith.constant 0 : i32
    %c0_i32_0 = arith.constant 0 : i32
    %c0_i32_1 = arith.constant 0 : i32
    return %c0_i32, %c0_i32_0 : i32, i32
  }
  func.func @transform_3(%arg0: i32, %arg1: i32) -> (i32, i32) {
    %c0_i32 = arith.constant 0 : i32
    %c0_i32_0 = arith.constant 0 : i32
    %c0_i32_1 = arith.constant 0 : i32
    return %c0_i32, %c0_i32_0 : i32, i32
  }
  func.func @transform_4(%arg0: i32, %arg1: i32) -> (i32, i32) {
    %c0_i32 = arith.constant 0 : i32
    %c0_i32_0 = arith.constant 0 : i32
    %c0_i32_1 = arith.constant 0 : i32
    return %c0_i32, %c0_i32_0 : i32, i32
  }
  func.func @transform_5(%arg0: i32, %arg1: i32) -> (i32, i32, i32) {
    %c0_i32 = arith.constant 0 : i32
    %c0_i32_0 = arith.constant 0 : i32
    return %arg0, %c0_i32, %arg1 : i32, i32, i32
  }
}

</mosaic_0001>

<llo_original>
// kernel: tpu_custom_call.1
$region0: #{tpu_custom_call.1}
  #allocation0 [shape = 'u32[]', space=smem, size = 0x4, offset = 0x4, fixed_abs, tag = 'smem constant byte address 0x4 - core index']
  #allocation1 [shape = 'u32[144,128]{1,0:T(1,128)}', space=vmem, size = 0x12000, scoped, tag = 'internal scratch']
  #allocation2 [shape = 'f32[1,1]{1,0:T(1,128)S(6)}', space=smem, size = 0x200, scoped, tag = 'scoped memory for tpu_custom_call.1']
  %s0 = inlined_call_operand.vmem [shape: f32[2,4,256], index: 0, kind: input, shape index: {}]
  %s1 = inlined_call_operand.vmem [shape: f32[32,4], index: 1, kind: input, shape index: {}]
  %s2 = inlined_call_operand.vmem [shape: f32[32,1], index: 2, kind: input, shape index: {}]
  %s3 = inlined_call_operand.vmem [shape: f32[1,32], index: 3, kind: input, shape index: {}]
  %s4 = inlined_call_operand.<no memory space> [shape: f32[1,1], index: 4, kind: input, shape index: {}]
  %s5 = inlined_call_operand.hbm [shape: f32[2,1,256], index: 5, kind: output, shape index: {}]
  %s6 = sld [smem:[#allocation0]]
  $region53: #{tpu_custom_call.1} parent=0
    _
  %s8 = ssub.s32 1, %s6
  %s9 = scalar_select 0, %s8, %s6
  %10 = sst [smem:[#allocation2]] %s4
  $region1: #{tpu_custom_call.1} parent=0
    #allocation3 [shape = 'u8[2048]{0}', space=vmem, size = 0x800, scoped, tag = 'output window, operand 0']
    #allocation4 [shape = 's32[2]{0}', space=sflag, size = 0x8, scoped, tag = 'scoped memory for tpu_custom_call.1']
    %11 = vsyncpa [#allocation4], 0
    %s12 = scalar_lea.sflag [#allocation4], 1
    %13 = vsyncpa %s12, 0
    loop: start=0, step=1, limit=4
    $region2: #{tpu_custom_call.1} parent=1 // loop_pre_header
      _
    $region3: #{tpu_custom_call.1} parent=1 // loop_header
      %s15 = sphi 0, %s19
      %p16 = scmp.ge.s32.totalorder %s15, 4
      %s22 = sphi 0, %s34
      %s23 = sphi 0, %s30
      %s24 = sphi 0, %s22
      %s25 = sphi 0, %s23
      %s26 = sphi 0, %s24
      %s27 = sphi 0, %s25
      %s39 = sphi 0, %s41
      %s42 = sphi 0, %s39
      %s43 = sphi 0, %s42
      %s59 = sphi 0, %s43
      %s63 = sphi 0, %s63
      %s65 = sphi 0, %s63
      %s66 = sphi 0, %s65
      %s80 = sphi 0, %s66
      %s84 = sphi 0, %s84
      %s86 = sphi 0, %s84
      %s87 = sphi 0, %s86
      %s101 = sphi 0, %s87
      %s105 = sphi 0, %s105
      %s107 = sphi 0, %s105
      %s108 = sphi 0, %s107
      %s122 = sphi 0, %s108
      %s126 = sphi 0, %s126
      %s128 = sphi 0, %s126
      %s129 = sphi 0, %s128
      %s143 = sphi 0, %s129
      %s151 = sphi 0, %s153
      %s154 = sphi 0, %s151
      %s155 = sphi 0, %s154
      %s171 = sphi 0, %s155
    $region4: #{tpu_custom_call.1} parent=1 // loop_header_branch
      %18 = sbr.rel (%p16) target = $region8
    $region5: #{tpu_custom_call.1} parent=1 // loop_body
      %s20 = ssub.s32 %s15, 1
      %s21 = ssub.s32 %s15, 2
      %s28 = sadd.s32 1, %s23
      %p29 = scmp.ge.s32.totalorder %s28, 1
      %s30 = scalar_select %p29, 0, %s28
      %s31 = sadd.s32 1, %s22
      %s32 = scalar_select %p29, %s31, %s22
      %p33 = scmp.ge.s32.totalorder %s32, 2
      %s34 = scalar_select %p33, 0, %s32
      %s35 = ssub.s32 %s22, %s34
      %s36 = ssub.s32 %s23, %s30
      %s37 = sor.u32 %s35, %s36
      %p38 = scmp.eq.s32.totalorder %s37, 0
      %s40 = sadd.s32 %s39, 1
      %s41 = scalar_select %p38, %s39, %s40
      %p44 = pneg %p38
      %p45 = scmp.eq.s32.totalorder %s15, 1
      %p46 = por %p44, %p45
      %p47 = scmp.ne.s32.totalorder %s39, %s42
      %p48 = scmp.eq.s32.totalorder %s15, 0
      %p49 = por %p47, %p48
      %p50 = scmp.ne.s32.totalorder %s39, %s42
      %p51 = scmp.eq.s32.totalorder %s20, 1
      %p52 = por %p50, %p51
      %p53 = scmp.ne.s32.totalorder %s42, %s43
      %p54 = scmp.eq.s32.totalorder %s20, 0
      %p55 = por %p53, %p54
      %p56 = scmp.ne.s32.totalorder %s42, %s43
      %p57 = scmp.eq.s32.totalorder %s21, 1
      %p58 = por %p56, %p57
      %p60 = scmp.ne.s32.totalorder %s43, %s59
      %p61 = scmp.eq.s32.totalorder %s21, 0
      %p62 = por %p60, %p61
      %s64 = sadd.s32 %s63, 1
      %p67 = scmp.eq.s32.totalorder %s15, 1
      %p68 = scmp.ne.s32.totalorder %s63, %s65
      %p69 = scmp.eq.s32.totalorder %s15, 0
      %p70 = por %p68, %p69
      %p71 = scmp.ne.s32.totalorder %s63, %s65
      %p72 = scmp.eq.s32.totalorder %s20, 1
      %p73 = por %p71, %p72
      %p74 = scmp.ne.s32.totalorder %s65, %s66
      %p75 = scmp.eq.s32.totalorder %s20, 0
      %p76 = por %p74, %p75
      %p77 = scmp.ne.s32.totalorder %s65, %s66
      %p78 = scmp.eq.s32.totalorder %s21, 1
      %p79 = por %p77, %p78
      %p81 = scmp.ne.s32.totalorder %s66, %s80
      %p82 = scmp.eq.s32.totalorder %s21, 0
      %p83 = por %p81, %p82
      %s85 = sadd.s32 %s84, 1
      %p88 = scmp.eq.s32.totalorder %s15, 1
      %p89 = scmp.ne.s32.totalorder %s84, %s86
      %p90 = scmp.eq.s32.totalorder %s15, 0
      %p91 = por %p89, %p90
      %p92 = scmp.ne.s32.totalorder %s84, %s86
      %p93 = scmp.eq.s32.totalorder %s20, 1
      %p94 = por %p92, %p93
      %p95 = scmp.ne.s32.totalorder %s86, %s87
      %p96 = scmp.eq.s32.totalorder %s20, 0
      %p97 = por %p95, %p96
      %p98 = scmp.ne.s32.totalorder %s86, %s87
      %p99 = scmp.eq.s32.totalorder %s21, 1
      %p100 = por %p98, %p99
      %p102 = scmp.ne.s32.totalorder %s87, %s101
      %p103 = scmp.eq.s32.totalorder %s21, 0
      %p104 = por %p102, %p103
      %s106 = sadd.s32 %s105, 1
      %p109 = scmp.eq.s32.totalorder %s15, 1
      %p110 = scmp.ne.s32.totalorder %s105, %s107
      %p111 = scmp.eq.s32.totalorder %s15, 0
      %p112 = por %p110, %p111
      %p113 = scmp.ne.s32.totalorder %s105, %s107
      %p114 = scmp.eq.s32.totalorder %s20, 1
      %p115 = por %p113, %p114
      %p116 = scmp.ne.s32.totalorder %s107, %s108
      %p117 = scmp.eq.s32.totalorder %s20, 0
      %p118 = por %p116, %p117
      %p119 = scmp.ne.s32.totalorder %s107, %s108
      %p120 = scmp.eq.s32.totalorder %s21, 1
      %p121 = por %p119, %p120
      %p123 = scmp.ne.s32.totalorder %s108, %s122
      %p124 = scmp.eq.s32.totalorder %s21, 0
      %p125 = por %p123, %p124
      %s127 = sadd.s32 %s126, 1
      %p130 = scmp.eq.s32.totalorder %s15, 1
      %p131 = scmp.ne.s32.totalorder %s126, %s128
      %p132 = scmp.eq.s32.totalorder %s15, 0
      %p133 = por %p131, %p132
      %p134 = scmp.ne.s32.totalorder %s126, %s128
      %p135 = scmp.eq.s32.totalorder %s20, 1
      %p136 = por %p134, %p135
      %p137 = scmp.ne.s32.totalorder %s128, %s129
      %p138 = scmp.eq.s32.totalorder %s20, 0
      %p139 = por %p137, %p138
      %p140 = scmp.ne.s32.totalorder %s128, %s129
      %p141 = scmp.eq.s32.totalorder %s21, 1
      %p142 = por %p140, %p141
      %p144 = scmp.ne.s32.totalorder %s129, %s143
      %p145 = scmp.eq.s32.totalorder %s21, 0
      %p146 = por %p144, %p145
      %s147 = ssub.s32 %s22, %s34
      %s148 = ssub.s32 %s23, %s30
      %s149 = sor.u32 %s147, %s148
      %p150 = scmp.eq.s32.totalorder %s149, 0
      %s152 = sadd.s32 %s151, 1
      %s153 = scalar_select %p150, %s151, %s152
      %p156 = pneg %p150
      %p157 = scmp.eq.s32.totalorder %s15, 1
      %p158 = por %p156, %p157
      %p159 = scmp.ne.s32.totalorder %s151, %s154
      %p160 = scmp.eq.s32.totalorder %s15, 0
      %p161 = por %p159, %p160
      %p162 = scmp.ne.s32.totalorder %s151, %s154
      %p163 = scmp.eq.s32.totalorder %s20, 1
      %p164 = por %p162, %p163
      %p165 = scmp.ne.s32.totalorder %s154, %s155
      %p166 = scmp.eq.s32.totalorder %s20, 0
      %p167 = por %p165, %p166
      %p168 = scmp.ne.s32.totalorder %s154, %s155
      %p169 = scmp.eq.s32.totalorder %s21, 1
      %p170 = por %p168, %p169
      %p172 = scmp.ne.s32.totalorder %s155, %s171
      %p173 = scmp.eq.s32.totalorder %s21, 0
      %p174 = por %p172, %p173
      %p175 = scmp.le.s32.totalorder 1, %s15
      %p176 = scmp.lt.s32.totalorder %s15, 3
      %p177 = pnand %p175, %p176
      %p178 = pneg %p177
      // Predicated region
      $region9: #{tpu_custom_call.1} parent=5 // pred_check
        _
      $region10: #{tpu_custom_call.1} parent=5 // pred_check_branch
        %180 = sbr.rel (%p177) target = $region12
      $region11: #{tpu_custom_call.1} parent=5 // pred_region
        %s181 = ssub.s32 %s15, 1
        // Predicated region
        $region13: #{tpu_custom_call.1} parent=11 // pred_check
          %p182 = pneg %p76
        $region14: #{tpu_custom_call.1} parent=11 // pred_check_branch
          %184 = sbr.rel (%p182) target = $region16
        $region15: #{tpu_custom_call.1} parent=11 // pred_region
          _
        $region16: #{tpu_custom_call.1} parent=11 // pred_fallthru
          _
        // Predicated region
        $region17: #{tpu_custom_call.1} parent=11 // pred_check
          %p185 = pneg %p97
        $region18: #{tpu_custom_call.1} parent=11 // pred_check_branch
          %187 = sbr.rel (%p185) target = $region20
        $region19: #{tpu_custom_call.1} parent=11 // pred_region
          _
        $region20: #{tpu_custom_call.1} parent=11 // pred_fallthru
          _
        // Predicated region
        $region21: #{tpu_custom_call.1} parent=11 // pred_check
          %p188 = pneg %p118
        $region22: #{tpu_custom_call.1} parent=11 // pred_check_branch
          %190 = sbr.rel (%p188) target = $region24
        $region23: #{tpu_custom_call.1} parent=11 // pred_region
          _
        $region24: #{tpu_custom_call.1} parent=11 // pred_fallthru
          _
        // Predicated region
        $region25: #{tpu_custom_call.1} parent=11 // pred_check
          %p191 = pneg %p139
        $region26: #{tpu_custom_call.1} parent=11 // pred_check_branch
          %193 = sbr.rel (%p191) target = $region28
        $region27: #{tpu_custom_call.1} parent=11 // pred_region
          _
        $region28: #{tpu_custom_call.1} parent=11 // pred_fallthru
          _
      $region12: #{tpu_custom_call.1} parent=5 // pred_fallthru
        _
      %p194 = scmp.lt.s32.totalorder %s15, 2
      // Predicated region
      $region29: #{tpu_custom_call.1} parent=5 // pred_check
        %p195 = pneg %p194
      $region30: #{tpu_custom_call.1} parent=5 // pred_check_branch
        %197 = sbr.rel (%p195) target = $region32
      $region31: #{tpu_custom_call.1} parent=5 // pred_region
        // Predicated region
        $region33: #{tpu_custom_call.1} parent=31 // pred_check
          %p198 = pneg %p49
        $region34: #{tpu_custom_call.1} parent=31 // pred_check_branch
          %200 = sbr.rel (%p198) target = $region36
        $region35: #{tpu_custom_call.1} parent=31 // pred_region
          %s201 = smul.u32 2, %s23
          %p202 = scmp.lt.s32.totalorder %s22, 1
          %s203 = scalar_select %p202, %s22, 1
          %p204 = scmp.lt.s32.totalorder %s201, 1
          %s205 = scalar_select %p204, %s201, 1
          %s206 = smul.addr %s203, 2
          %s207 = sadd.s32 %s205, %s206
          %s208 = smul.addr %s207, 4
          %s209 = scalar_lea.vmem %s0, %s208
          %s210 = smul.u32 2, %s23
        $region36: #{tpu_custom_call.1} parent=31 // pred_fallthru
          _
      $region32: #{tpu_custom_call.1} parent=5 // pred_fallthru
        _
      %p211 = scmp.le.s32.totalorder 1, %s15
      %p212 = scmp.lt.s32.totalorder %s15, 3
      %p213 = pnand %p211, %p212
      %p214 = pneg %p213
      // Predicated region
      $region37: #{tpu_custom_call.1} parent=5 // pred_check
        _
      $region38: #{tpu_custom_call.1} parent=5 // pred_check_branch
        %216 = sbr.rel (%p213) target = $region40
      $region39: #{tpu_custom_call.1} parent=5 // pred_region
        %s217 = ssub.s32 %s15, 1
        %s218 = smul.u32 2, %s25
        %p219 = scmp.lt.s32.totalorder %s24, 1
        %s220 = scalar_select %p219, %s24, 1
        %p221 = scmp.lt.s32.totalorder %s218, 1
        %s222 = scalar_select %p221, %s218, 1
        %s223 = smul.addr %s220, 2
        %s224 = sadd.s32 %s222, %s223
        %s225 = smul.addr %s224, 4
        %s226 = scalar_lea.vmem %s0, %s225
        %p227 = pneg %p55
        %p228 = pneg %p52
        %p229 = pneg %p76
        %p230 = pneg %p73
        %p231 = pneg %p97
        %p232 = pneg %p94
        %p233 = pneg %p118
        %p234 = pneg %p115
        %p235 = pneg %p139
        %p236 = pneg %p136
        %p237 = pneg %p167
        %p238 = pneg %p164
        %s239 = sand.u32 %s154, 1
        %s240 = scalar_lea.sflag [#allocation4], %s239
        %s241 = sand.u32 %s154, 1
        %s242 = smul.addr %s241, 2
        %s243 = scalar_lea.vmem [#allocation3], %s242
        %s244 = smul.u32 2, %s25
        %p245 = scmp.lt.s32.totalorder %s24, 1
        %s246 = scalar_select %p245, %s24, 1
        %p247 = scmp.lt.s32.totalorder %s244, 1
        %s248 = scalar_select %p247, %s244, 1
        %s249 = smul.addr %s246, 2
        %s250 = sadd.s32 %s248, %s249
        %s251 = smul.addr %s250, 4
        %s252 = scalar_lea.vmem %s0, %s251
        %s253 = smul.u32 2, %s25
        %s254 = smul.u32 2, %s25
        %v255 = vld [vmem:[%s252] sm:$0xff]
        %v256 = vld [vmem:[%s1] sm:$0xff]
        %v257 = vld [vmem:[%s1 + $0x8] sm:$0xff]
        %v258 = vld [vmem:[%s1 + $0x10] sm:$0xff]
        %v259 = vld [vmem:[%s1 + $0x18] sm:$0xff]
        %v260 = vld [vmem:[%s2] sm:$0xff]
        %v261 = vld [vmem:[%s2 + $0x8] sm:$0xff]
        %v262 = vld [vmem:[%s2 + $0x10] sm:$0xff]
        %v263 = vld [vmem:[%s2 + $0x18] sm:$0xff]
        %265 = vset.pattern.permute.xlu0 0
        %266 = vperm.xlu0 %265, %v260
        %v267 = vpop.permute.xlu0 %266
        %270 = vset.pattern.permute.xlu0 0
        %271 = vperm.xlu0 %270, %v261
        %v272 = vpop.permute.xlu0 %271
        %275 = vset.pattern.permute.xlu0 0
        %276 = vperm.xlu0 %275, %v262
        %v277 = vpop.permute.xlu0 %276
        %280 = vset.pattern.permute.xlu0 0
        %281 = vperm.xlu0 %280, %v263
        %v282 = vpop.permute.xlu0 %281
        %v285 = vcombine.high %v255, %v255
        %vm286 = vcmask 31744
        %v288 = vsel %vm286, %v256, 0
        %v291 = vsel %vm286, %v257, 0
        %v294 = vsel %vm286, %v258, 0
        %v297 = vsel %vm286, %v259, 0
        %vm299 = vcmask 1043456
        %v300 = vsel %vm299, %v255, 0
        %v302 = vsel %vm299, %v285, 0
        %304 = vmatprep.subr.mxu0 %v302
        %305 = vmatpush1.msra.mxu0 %v300
        %306 = vmatprep.subr.mxu0 0.0
        %307 = vmatpush1.msra.mxu0 0.0
        %308 = vmatprep.subr.mxu0 0.0
        %309 = vmatpush1.msra.mxu0 0.0
        %310 = vmatprep.subr.mxu0 0.0
        %311 = vmatpush1.msra.mxu0 0.0
        %312 = vmatprep.subr.mxu0 0.0
        %313 = vmatpush1.msra.mxu0 0.0
        %314 = vmatprep.subr.mxu0 0.0
        %315 = vmatpush1.msra.mxu0 0.0
        %316 = vmatprep.subr.mxu0 0.0
        %317 = vmatpush1.msra.mxu0 0.0
        %318 = vmatprep.subr.mxu0 0.0
        %319 = vmatpush1.msra.mxu0 0.0
        %320 = vmatprep.subr.mxu0 0.0
        %321 = vmatpush1.msra.mxu0 0.0
        %322 = vmatprep.subr.mxu0 0.0
        %323 = vmatpush1.msra.mxu0 0.0
        %324 = vmatprep.subr.mxu0 0.0
        %325 = vmatpush1.msra.mxu0 0.0
        %326 = vmatprep.subr.mxu0 0.0
        %327 = vmatpush1.msra.mxu0 0.0
        %328 = vmatprep.subr.mxu0 0.0
        %329 = vmatpush1.msra.mxu0 0.0
        %330 = vmatprep.subr.mxu0 0.0
        %331 = vmatpush1.msra.mxu0 0.0
        %332 = vmatprep.subr.mxu0 0.0
        %333 = vmatpush1.msra.mxu0 0.0
        %334 = vmatprep.subr.mxu0 0.0
        %335 = vmatpush1.msra.mxu0 0.0
        %336 = vmatprep.subr.mxu0 0.0
        %337 = vmatpush1.msra.mxu0 0.0
        %338 = vmatprep.subr.mxu0 0.0
        %339 = vmatpush1.msra.mxu0 0.0
        %340 = vmatprep.subr.mxu0 0.0
        %341 = vmatpush1.msra.mxu0 0.0
        %342 = vmatprep.subr.mxu0 0.0
        %343 = vmatpush1.msra.mxu0 0.0
        %344 = vmatprep.subr.mxu0 0.0
        %345 = vmatpush1.msra.mxu0 0.0
        %346 = vmatprep.subr.mxu0 0.0
        %347 = vmatpush1.msra.mxu0 0.0
        %348 = vmatprep.subr.mxu0 0.0
        %349 = vmatpush1.msra.mxu0 0.0
        %350 = vmatprep.subr.mxu0 0.0
        %351 = vmatpush1.msra.mxu0 0.0
        %352 = vmatprep.subr.mxu0 0.0
        %353 = vmatpush1.msra.mxu0 0.0
        %354 = vmatprep.subr.mxu0 0.0
        %355 = vmatpush1.msra.mxu0 0.0
        %356 = vmatprep.subr.mxu0 0.0
        %357 = vmatpush1.msra.mxu0 0.0
        %358 = vmatprep.subr.mxu0 0.0
        %359 = vmatpush1.msra.mxu0 0.0
        %360 = vmatprep.subr.mxu0 0.0
        %361 = vmatpush1.msra.mxu0 0.0
        %362 = vmatprep.subr.mxu0 0.0
        %363 = vmatpush1.msra.mxu0 0.0
        %364 = vmatprep.subr.mxu0 0.0
        %365 = vmatpush1.msra.mxu0 0.0
        %366 = vmatprep.subr.mxu0 0.0
        %367 = vmatpush1.msra.mxu0 0.0
        %368 = vmatprep.mubr.f32.mxu0 0.0
        %369 = vmatmul.mubr.f32.gmra.mrb[0].mxu0 %v288
        %v370 = vpop.f32.mrb[0].mxu0
        %v371 = vadd.f32 %v267, %v370
        %v372 = vpop.f32.mrb[0].mxu0
        %v373 = vadd.f32 %v267, %v372
        %374 = vmatprep.mubr.f32.mxu0 0.0
        %375 = vmatmul.mubr.f32.gmra.mrb[0].mxu0 %v291
        %v376 = vpop.f32.mrb[0].mxu0
        %v377 = vadd.f32 %v272, %v376
        %v378 = vpop.f32.mrb[0].mxu0
        %v379 = vadd.f32 %v272, %v378
        %380 = vmatprep.mubr.f32.mxu0 0.0
        %381 = vmatmul.mubr.f32.gmra.mrb[0].mxu0 %v294
        %v382 = vpop.f32.mrb[0].mxu0
        %v383 = vadd.f32 %v277, %v382
        %v384 = vpop.f32.mrb[0].mxu0
        %v385 = vadd.f32 %v277, %v384
        %386 = vmatprep.mubr.f32.mxu0 0.0
        %387 = vmatmul.mubr.f32.gmra.mrb[0].mxu0 %v297
        %v388 = vpop.f32.mrb[0].mxu0
        %v389 = vadd.f32 %v282, %v388
        %v390 = vpop.f32.mrb[0].mxu0
        %v391 = vadd.f32 %v282, %v390
        %392 = vdwg.mxu0
        %v393 = vmax.f32 %v371, 0.0
        %v394 = vmax.f32 %v373, 0.0
        %v395 = vmax.f32 %v377, 0.0
        %v396 = vmax.f32 %v379, 0.0
        %v397 = vmax.f32 %v383, 0.0
        %v398 = vmax.f32 %v385, 0.0
        %v399 = vmax.f32 %v389, 0.0
        %v400 = vmax.f32 %v391, 0.0
        %v401 = vld [vmem:[%s3] sm:$0x1]
        %s402 = sld [smem:[#allocation2]]
        %v403 = vstv %s402
        %vm404 = vcmask 261120
        %v406 = vsel %vm404, %v401, 0
        %408 = vmatprep.subr.mxu0 %v394
        %409 = vmatpush1.msra.mxu0 %v393
        %410 = vmatprep.subr.mxu0 %v396
        %411 = vmatpush1.msra.mxu0 %v395
        %412 = vmatprep.subr.mxu0 %v398
        %413 = vmatpush1.msra.mxu0 %v397
        %414 = vmatprep.subr.mxu0 %v400
        %415 = vmatpush1.msra.mxu0 %v399
        %416 = vmatprep.subr.mxu0 0.0
        %417 = vmatpush1.msra.mxu0 0.0
        %418 = vmatprep.subr.mxu0 0.0
        %419 = vmatpush1.msra.mxu0 0.0
        %420 = vmatprep.subr.mxu0 0.0
        %421 = vmatpush1.msra.mxu0 0.0
        %422 = vmatprep.subr.mxu0 0.0
        %423 = vmatpush1.msra.mxu0 0.0
        %424 = vmatprep.subr.mxu0 0.0
        %425 = vmatpush1.msra.mxu0 0.0
        %426 = vmatprep.subr.mxu0 0.0
        %427 = vmatpush1.msra.mxu0 0.0
        %428 = vmatprep.subr.mxu0 0.0
        %429 = vmatpush1.msra.mxu0 0.0
        %430 = vmatprep.subr.mxu0 0.0
        %431 = vmatpush1.msra.mxu0 0.0
        %432 = vmatprep.subr.mxu0 0.0
        %433 = vmatpush1.msra.mxu0 0.0
        %434 = vmatprep.subr.mxu0 0.0
        %435 = vmatpush1.msra.mxu0 0.0
        %436 = vmatprep.subr.mxu0 0.0
        %437 = vmatpush1.msra.mxu0 0.0
        %438 = vmatprep.subr.mxu0 0.0
        %439 = vmatpush1.msra.mxu0 0.0
        %440 = vmatprep.subr.mxu0 0.0
        %441 = vmatpush1.msra.mxu0 0.0
        %442 = vmatprep.subr.mxu0 0.0
        %443 = vmatpush1.msra.mxu0 0.0
        %444 = vmatprep.subr.mxu0 0.0
        %445 = vmatpush1.msra.mxu0 0.0
        %446 = vmatprep.subr.mxu0 0.0
        %447 = vmatpush1.msra.mxu0 0.0
        %448 = vmatprep.subr.mxu0 0.0
        %449 = vmatpush1.msra.mxu0 0.0
        %450 = vmatprep.subr.mxu0 0.0
        %451 = vmatpush1.msra.mxu0 0.0
        %452 = vmatprep.subr.mxu0 0.0
        %453 = vmatpush1.msra.mxu0 0.0
        %454 = vmatprep.subr.mxu0 0.0
        %455 = vmatpush1.msra.mxu0 0.0
        %456 = vmatprep.subr.mxu0 0.0
        %457 = vmatpush1.msra.mxu0 0.0
        %458 = vmatprep.subr.mxu0 0.0
        %459 = vmatpush1.msra.mxu0 0.0
        %460 = vmatprep.subr.mxu0 0.0
        %461 = vmatpush1.msra.mxu0 0.0
        %462 = vmatprep.subr.mxu0 0.0
        %463 = vmatpush1.msra.mxu0 0.0
        %464 = vmatprep.subr.mxu0 0.0
        %465 = vmatpush1.msra.mxu0 0.0
        %466 = vmatprep.subr.mxu0 0.0
        %467 = vmatpush1.msra.mxu0 0.0
        %468 = vmatprep.subr.mxu0 0.0
        %469 = vmatpush1.msra.mxu0 0.0
        %470 = vmatprep.subr.mxu0 0.0
        %471 = vmatpush1.msra.mxu0 0.0
        %472 = vmatprep.mubr.f32.mxu0 0.0
        %473 = vmatmul.mubr.f32.gmra.mrb[0].mxu0 %v406
        %v474 = vpop.f32.mrb[0].mxu0
        %v475 = vadd.f32 %v403, %v474
        %v476 = vpop.f32.mrb[0].mxu0
        %v477 = vadd.f32 %v403, %v476
        %478 = vdwg.mxu0
        %v479 = vsub.f32 0.0, %v475
        %v480 = vsub.f32 0.0, %v477
        %v481 = vmul.f32 %v479, 1.442695
        %v482 = vpow.pop %v481
        %v483 = vmul.f32 %v480, 1.442695
        %v484 = vpow.pop %v483
        %v485 = vadd.f32 %v482, 1.0
        %v486 = vadd.f32 %v484, 1.0
        %v487 = vrcp.pop %v485
        %v488 = vmul.f32 1.0, %v487
        %v489 = vrcp.pop %v486
        %v490 = vmul.f32 1.0, %v489
        %v493 = vcombine.low %v488, %v490
        %v495 = vunpack.c.l.s4 1966171168
        %v496 = vunpack.c.0.s8 %v495
        %v497 = vlaneseq
        %v498 = vshrl.u32 %v497, 7
        %v499 = vsub.s32 %v496, %v498
        %v500 = vrot.slane %v493, %v499
        %v502 = vunpack.c.l.s4 1966171168
        %v503 = vunpack.c.0.s8 %v502
        %v504 = vlaneseq
        %v505 = vshrl.u32 %v504, 7
        %v506 = vsub.s32 %v503, %v505
        %v507 = vrot.slane %v500, %v506
        %v509 = vlaneseq
        %vm510 = vcmp.ge.s32.totalorder %v509, 0
        %vm511 = vcmp.lt.s32.totalorder %v509, 256
        %vm512 = vmand %vm510, %vm511
        %513 = vst.msk [vmem:[%s243] sm:$0x3] %vm512, %v507
        %s514 = sand.u32 %s154, 1
        %s515 = scalar_lea.sflag [#allocation4], %s514
        %s516 = sand.u32 %s154, 1
        %s517 = smul.addr %s516, 2
        %s518 = scalar_lea.vmem [#allocation3], %s517
        // Predicated region
        $region41: #{tpu_custom_call.1} parent=39 // pred_check
          %p519 = pneg %p164
        $region42: #{tpu_custom_call.1} parent=39 // pred_check_branch
          %521 = sbr.rel (%p519) target = $region44
        $region43: #{tpu_custom_call.1} parent=39 // pred_region
          %s522 = smul.u32 2, %s25
          %s524 = ssub.s32 32, 32
          %525 = vsyncadd %s515, %s524
          %s526 = smul.addr %s24, 2
          %s527 = sadd.s32 %s522, %s526
          %s528 = smul.addr %s527, 16
          %s529 = scalar_lea.hbm %s5, %s528
          %s531 = sshll.u32 %s518, 4
          %s532 = int_to_ptr.vmem [resolvable:$true] %s531
          %534 = dma.vmem_to_hbm [thread:$0]  %s532, 32, %s529, %s515
        $region44: #{tpu_custom_call.1} parent=39 // pred_fallthru
          _
      $region40: #{tpu_custom_call.1} parent=5 // pred_fallthru
        _
      %p535 = scmp.le.s32.totalorder 2, %s15
      // Predicated region
      $region45: #{tpu_custom_call.1} parent=5 // pred_check
        %p536 = pneg %p535
      $region46: #{tpu_custom_call.1} parent=5 // pred_check_branch
        %538 = sbr.rel (%p536) target = $region48
      $region47: #{tpu_custom_call.1} parent=5 // pred_region
        %s539 = ssub.s32 %s15, 2
        // Predicated region
        $region49: #{tpu_custom_call.1} parent=47 // pred_check
          %p540 = pneg %p170
        $region50: #{tpu_custom_call.1} parent=47 // pred_check_branch
          %542 = sbr.rel (%p540) target = $region52
        $region51: #{tpu_custom_call.1} parent=47 // pred_region
          %s543 = sand.u32 %s155, 1
          %s544 = scalar_lea.sflag [#allocation4], %s543
          %s545 = sand.u32 %s155, 1
          %s546 = smul.addr %s545, 2
          %s547 = scalar_lea.vmem [#allocation3], %s546
          %548 = dma.done %s544, 32
        $region52: #{tpu_custom_call.1} parent=47 // pred_fallthru
          _
      $region48: #{tpu_custom_call.1} parent=5 // pred_fallthru
        _
    $region6: #{tpu_custom_call.1} parent=1 // loop_footer
      %s19 = sadd.s32 1, %s15
    $region7: #{tpu_custom_call.1} parent=1 // loop_footer_branch
      %14 = sbr.rel target = $region3
    $region8: #{tpu_custom_call.1} parent=1 // loop_exit
      _
    %549 = vsyncpa [#allocation4], 1
    %s550 = scalar_lea.sflag [#allocation4], 1
    %551 = vsyncpa %s550, 1

</llo_original>
